<compile_context>
chip_gen: v7x
topology: tpu7x:2x2x1
jax: 0.10.0
libtpu: 0.0.40
codegen_flags: <defaults>
</compile_context>

<pallas_src>
import functools

import jax
import jax.numpy as jnp
from jax.experimental import pallas as pl
from jax.experimental.pallas import tpu as pltpu


def _cross_attention_kernel(img_ref, txt_ref, img_out_ref, txt_out_ref, *, scale):
    # img_ref: (Bb, N_img, D), txt_ref: (Bb, N_txt, D) — native dtype into the MXU,
    # f32 accumulation via preferred_element_type.
    img = img_ref[...]
    txt = txt_ref[...]

    # Shared logits: s[b, i, t] = <img[b, i], txt[b, t]> * scale  (computed once).
    s = jnp.einsum("bid,btd->bit", img, txt,
                   preferred_element_type=jnp.float32) * scale      # (Bb, N_img, N_txt)

    # ---- image -> text: softmax over the text axis (axis=-1, lane axis) ----
    p_i2t = jnp.exp(s - jnp.max(s, axis=-1, keepdims=True))
    p_i2t = p_i2t / jnp.sum(p_i2t, axis=-1, keepdims=True)
    img_att = jnp.einsum("bit,btd->bid", p_i2t.astype(txt.dtype), txt,
                         preferred_element_type=jnp.float32)        # (Bb, N_img, D)
    img_out_ref[...] = img_att.astype(img_out_ref.dtype)

    # ---- text -> image: reuse s; softmax over the image axis (axis=-2) ----
    # No f32 transpose is materialized; the contraction below consumes p_t2i directly.
    p_t2i = jnp.exp(s - jnp.max(s, axis=-2, keepdims=True))
    p_t2i = p_t2i / jnp.sum(p_t2i, axis=-2, keepdims=True)
    txt_att = jnp.einsum("bit,bid->btd", p_t2i.astype(img.dtype), img,
                         preferred_element_type=jnp.float32)        # (Bb, N_txt, D)
    txt_out_ref[...] = txt_att.astype(txt_out_ref.dtype)


def _vmem_capacity_bytes():
    try:
        return int(pltpu.get_tpu_info().vmem_capacity_bytes)
    except Exception:
        return 64 * 1024 * 1024  # conservative default (v7x per-TC VMEM)


def _block_vmem_bytes(bb, n_img, n_txt, d, itemsize):
    # Double-buffered input + output blocks.
    io = 2 * 2 * bb * (n_img + n_txt) * d * itemsize
    # f32 intermediates inside the body (logits, probs, slack).
    interm = 3 * bb * n_img * n_txt * 4
    return io + interm


def _pick_batch_block(batch, n_img, n_txt, d, itemsize, budget):
    # Largest divisor of `batch` whose block fits the VMEM budget; additionally keep
    # at least 2 grid steps (when batch >= 2) so v7x can shard the batch axis across
    # its two TensorCores.
    cap = batch // 2 if batch >= 2 else 1
    cap = max(cap, 1)
    best = 1
    for bb in range(1, cap + 1):
        if batch % bb == 0 and _block_vmem_bytes(bb, n_img, n_txt, d, itemsize) <= budget:
            best = bb
    return best


def cross_attention(image_features, text_features):
    """Pallas equivalent of CrossAttention.forward.

    image_features: [B, N_img, D]
    text_features:  [B, N_txt, D]
    returns (image_attended [B, N_img, D], text_attended [B, N_txt, D])
    """
    B, n_img, dim = image_features.shape
    Bt, n_txt, dim_t = text_features.shape
    assert B == Bt and dim == dim_t
    scale = float(dim) ** (-0.5)

    itemsize = jnp.dtype(image_features.dtype).itemsize

    # ~78% of physical VMEM: ~100 MiB on v5e/v6e (128 MiB), ~50 MiB on v7x (64 MiB).
    vmem_budget = int(0.78 * _vmem_capacity_bytes())
    bb = _pick_batch_block(B, n_img, n_txt, dim, itemsize, vmem_budget)

    kernel = functools.partial(_cross_attention_kernel, scale=scale)

    io_bytes = 2 * B * (n_img + n_txt) * dim * itemsize   # read inputs + write outputs
    cost = pl.CostEstimate(
        flops=6 * B * n_img * n_txt * dim,                 # shared QK^T + two P@V matmuls
        bytes_accessed=io_bytes,
        transcendentals=2 * B * n_img * n_txt,
    )

    img_att, txt_att = pl.pallas_call(
        kernel,
        out_shape=(
            jax.ShapeDtypeStruct((B, n_img, dim), image_features.dtype),
            jax.ShapeDtypeStruct((B, n_txt, dim), text_features.dtype),
        ),
        grid_spec=pltpu.PrefetchScalarGridSpec(
            num_scalar_prefetch=0,
            grid=(B // bb,),
            in_specs=[
                pl.BlockSpec((bb, n_img, dim), lambda b: (b, 0, 0)),
                pl.BlockSpec((bb, n_txt, dim), lambda b: (b, 0, 0)),
            ],
            out_specs=[
                pl.BlockSpec((bb, n_img, dim), lambda b: (b, 0, 0)),
                pl.BlockSpec((bb, n_txt, dim), lambda b: (b, 0, 0)),
            ],
        ),
        compiler_params=pltpu.CompilerParams(
            dimension_semantics=("parallel",),
            vmem_limit_bytes=vmem_budget,
        ),
        cost_estimate=cost,
    )(image_features, text_features)

    return img_att, txt_att


def _reference(image_features, text_features):
    dim = image_features.shape[-1]
    scale = dim ** (-0.5)
    s_i2t = jnp.einsum("bid,btd->bit", image_features, text_features) * scale
    p_i2t = jax.nn.softmax(s_i2t, axis=-1)
    img_att = jnp.einsum("bit,btd->bid", p_i2t, text_features)
    s_t2i = jnp.einsum("btd,bid->bti", text_features, image_features) * scale
    p_t2i = jax.nn.softmax(s_t2i, axis=-1)
    txt_att = jnp.einsum("bti,bid->btd", p_t2i, image_features)
    return img_att, txt_att


if __name__ == "__main__":
    key = jax.random.PRNGKey(0)
    k_img, k_txt = jax.random.split(key)

    B, N_IMG, N_TXT, D = 2, 16, 8, 32
    image_features = jax.random.normal(k_img, (B, N_IMG, D), dtype=jnp.float32)
    text_features = jax.random.normal(k_txt, (B, N_TXT, D), dtype=jnp.float32)

    img_att, txt_att = cross_attention(image_features, text_features)
    jax.block_until_ready((img_att, txt_att))

    img_ref, txt_ref = _reference(image_features, text_features)
    assert jnp.allclose(img_att, img_ref, atol=1e-5, rtol=1e-5)
    assert jnp.allclose(txt_att, txt_ref, atol=1e-5, rtol=1e-5)

    print("KERNEL_OK")
</pallas_src>

<mosaic_0001>
module attributes {stable_mosaic.version = 11 : i64} {
  func.func @_cross_attention_kernel(%arg0: i32, %arg1: memref<1x16x32xf32, #tpu.memory_space<vmem>>, %arg2: memref<1x8x32xf32, #tpu.memory_space<vmem>>, %arg3: memref<1x16x32xf32, #tpu.memory_space<vmem>>, %arg4: memref<1x8x32xf32, #tpu.memory_space<vmem>>) attributes {dimension_semantics = [#tpu.dimension_semantics<parallel>], iteration_bounds = array<i64: 2>, scalar_prefetch = 0 : i64, scratch_operands = 0 : i64, tpu.core_type = #tpu.core_type<tc>, window_params = [{transform_indices = @transform_0, window_bounds = array<i64: 1, 16, 32>}, {transform_indices = @transform_1, window_bounds = array<i64: 1, 8, 32>}, {transform_indices = @transform_2, window_bounds = array<i64: 1, 16, 32>}, {transform_indices = @transform_3, window_bounds = array<i64: 1, 8, 32>}]} {
    %c0 = arith.constant 0 : index
    %c0_0 = arith.constant 0 : index
    %c0_1 = arith.constant 0 : index
    %0 = vector.load %arg1[%c0, %c0_0, %c0_1] : memref<1x16x32xf32, #tpu.memory_space<vmem>>, vector<1x16x32xf32>
    %c0_2 = arith.constant 0 : index
    %c0_3 = arith.constant 0 : index
    %c0_4 = arith.constant 0 : index
    %1 = vector.load %arg2[%c0_2, %c0_3, %c0_4] : memref<1x8x32xf32, #tpu.memory_space<vmem>>, vector<1x8x32xf32>
    "tpu.trace_start"() <{level = 10 : i32, message = "bid,btd->bit"}> : () -> ()
    %cst = arith.constant dense<0.000000e+00> : vector<1x16x8xf32>
    %2 = tpu.matmul %0, %1, %cst {dimension_numbers = #tpu.dot_dimension_numbers<[2], [2], [1], [1], [0, 0, 0, 1, 1, 1], [0], [0]>} : vector<1x16x32xf32>, vector<1x8x32xf32>, vector<1x16x8xf32> -> vector<1x16x8xf32>
    "tpu.trace_stop"() : () -> ()
    %cst_5 = arith.constant 0.176776692 : f32
    %3 = vector.broadcast %cst_5 : f32 to vector<1x16x8xf32>
    %4 = arith.mulf %2, %3 : vector<1x16x8xf32>
    %cst_6 = arith.constant dense<0xFF800000> : vector<1x16xf32>
    %5 = vector.multi_reduction <maximumf>, %4, %cst_6 [2] : vector<1x16x8xf32> to vector<1x16xf32>
    %6 = vector.shape_cast %5 : vector<1x16xf32> to vector<1x16x1xf32>
    %7 = vector.broadcast %6 : vector<1x16x1xf32> to vector<1x16x8xf32>
    %8 = arith.subf %4, %7 : vector<1x16x8xf32>
    %9 = math.exp %8 : vector<1x16x8xf32>
    %cst_7 = arith.constant dense<0.000000e+00> : vector<1x16xf32>
    %10 = vector.multi_reduction <add>, %9, %cst_7 [2] : vector<1x16x8xf32> to vector<1x16xf32>
    %11 = vector.shape_cast %10 : vector<1x16xf32> to vector<1x16x1xf32>
    %12 = vector.broadcast %11 : vector<1x16x1xf32> to vector<1x16x8xf32>
    %13 = arith.divf %9, %12 : vector<1x16x8xf32>
    "tpu.trace_start"() <{level = 10 : i32, message = "bit,btd->bid"}> : () -> ()
    %cst_8 = arith.constant dense<0.000000e+00> : vector<1x16x32xf32>
    %14 = tpu.matmul %13, %1, %cst_8 {dimension_numbers = #tpu.dot_dimension_numbers<[2], [1], [1], [2], [0, 0, 0, 1, 1, 2], [0], [0]>} : vector<1x16x8xf32>, vector<1x8x32xf32>, vector<1x16x32xf32> -> vector<1x16x32xf32>
    "tpu.trace_stop"() : () -> ()
    %c0_9 = arith.constant 0 : index
    %c0_10 = arith.constant 0 : index
    %c0_11 = arith.constant 0 : index
    %15 = vector.load %arg3[%c0_9, %c0_10, %c0_11] : memref<1x16x32xf32, #tpu.memory_space<vmem>>, vector<1x16x32xf32>
    tpu.vector_store %arg3[%c0_9, %c0_10, %c0_11], %14 {strides = array<i32>} : memref<1x16x32xf32, #tpu.memory_space<vmem>>, vector<1x16x32xf32>,
    %cst_12 = arith.constant dense<0xFF800000> : vector<1x8xf32>
    %16 = vector.multi_reduction <maximumf>, %4, %cst_12 [1] : vector<1x16x8xf32> to vector<1x8xf32>
    %17 = vector.shape_cast %16 : vector<1x8xf32> to vector<1x1x8xf32>
    %18 = vector.broadcast %17 : vector<1x1x8xf32> to vector<1x16x8xf32>
    %19 = arith.subf %4, %18 : vector<1x16x8xf32>
    %20 = math.exp %19 : vector<1x16x8xf32>
    %cst_13 = arith.constant dense<0.000000e+00> : vector<1x8xf32>
    %21 = vector.multi_reduction <add>, %20, %cst_13 [1] : vector<1x16x8xf32> to vector<1x8xf32>
    %22 = vector.shape_cast %21 : vector<1x8xf32> to vector<1x1x8xf32>
    %23 = vector.broadcast %22 : vector<1x1x8xf32> to vector<1x16x8xf32>
    %24 = arith.divf %20, %23 : vector<1x16x8xf32>
    "tpu.trace_start"() <{level = 10 : i32, message = "bit,bid->btd"}> : () -> ()
    %cst_14 = arith.constant dense<0.000000e+00> : vector<1x8x32xf32>
    %25 = tpu.matmul %24, %0, %cst_14 {dimension_numbers = #tpu.dot_dimension_numbers<[1], [1], [2], [2], [0, 0, 0, 2, 1, 2], [0], [0]>} : vector<1x16x8xf32>, vector<1x16x32xf32>, vector<1x8x32xf32> -> vector<1x8x32xf32>
    "tpu.trace_stop"() : () -> ()
    %c0_15 = arith.constant 0 : index
    %c0_16 = arith.constant 0 : index
    %c0_17 = arith.constant 0 : index
    %26 = vector.load %arg4[%c0_15, %c0_16, %c0_17] : memref<1x8x32xf32, #tpu.memory_space<vmem>>, vector<1x8x32xf32>
    tpu.vector_store %arg4[%c0_15, %c0_16, %c0_17], %25 {strides = array<i32>} : memref<1x8x32xf32, #tpu.memory_space<vmem>>, vector<1x8x32xf32>,
    return
  }
  func.func @transform_0(%arg0: i32) -> (i32, i32, i32) {
    %c0_i32 = arith.constant 0 : i32
    %c0_i32_0 = arith.constant 0 : i32
    %c0_i32_1 = arith.constant 0 : i32
    return %arg0, %c0_i32, %c0_i32_0 : i32, i32, i32
  }
  func.func @transform_1(%arg0: i32) -> (i32, i32, i32) {
    %c0_i32 = arith.constant 0 : i32
    %c0_i32_0 = arith.constant 0 : i32
    %c0_i32_1 = arith.constant 0 : i32
    return %arg0, %c0_i32, %c0_i32_0 : i32, i32, i32
  }
  func.func @transform_2(%arg0: i32) -> (i32, i32, i32) {
    %c0_i32 = arith.constant 0 : i32
    %c0_i32_0 = arith.constant 0 : i32
    %c0_i32_1 = arith.constant 0 : i32
    return %arg0, %c0_i32, %c0_i32_0 : i32, i32, i32
  }
  func.func @transform_3(%arg0: i32) -> (i32, i32, i32) {
    %c0_i32 = arith.constant 0 : i32
    %c0_i32_0 = arith.constant 0 : i32
    %c0_i32_1 = arith.constant 0 : i32
    return %arg0, %c0_i32, %c0_i32_0 : i32, i32, i32
  }
}

</mosaic_0001>

<llo_original>
// kernel: tpu_custom_call.1
$region0: #{tpu_custom_call.1}
  #allocation0 [shape = 'u32[]', space=smem, size = 0x4, offset = 0x4, fixed_abs, tag = 'smem constant byte address 0x4 - core index']
  #allocation1 [shape = 'u32[144,128]{1,0:T(1,128)}', space=vmem, size = 0x12000, scoped, tag = 'internal scratch']
  %s0 = inlined_call_operand.hbm [shape: f32[2,16,32], index: 0, kind: input, shape index: {}]
  %s1 = inlined_call_operand.hbm [shape: f32[2,8,32], index: 1, kind: input, shape index: {}]
  %s2 = inlined_call_operand.hbm [shape: f32[2,16,32], index: 2, kind: output, shape index: {0}]
  %s3 = inlined_call_operand.hbm [shape: f32[2,8,32], index: 3, kind: output, shape index: {1}]
  %4 = xla_tuple %s2, %s3
  %s5 = sld [smem:[#allocation0]]
  $region57: #{tpu_custom_call.1} parent=0
    _
  %s7 = ssub.s32 1, %s5
  %s8 = scalar_select 0, %s7, %s5
  $region1: #{tpu_custom_call.1} parent=0
    #allocation2 [shape = 'u8[16384]{0}', space=vmem, size = 0x4000, scoped, tag = 'input window, operand 0']
    #allocation3 [shape = 's32[2]{0}', space=sflag, size = 0x8, scoped, tag = 'scoped memory for tpu_custom_call.1']
    #allocation4 [shape = 's32[2]{0}', space=sflag, size = 0x8, scoped, tag = 'scoped memory for tpu_custom_call.1']
    #allocation5 [shape = 'u8[8192]{0}', space=vmem, size = 0x2000, scoped, tag = 'input window, operand 1']
    #allocation6 [shape = 's32[2]{0}', space=sflag, size = 0x8, scoped, tag = 'scoped memory for tpu_custom_call.1']
    #allocation7 [shape = 'u8[16384]{0}', space=vmem, size = 0x4000, scoped, tag = 'output window, operand 0']
    #allocation8 [shape = 'u8[8192]{0}', space=vmem, size = 0x2000, scoped, tag = 'output window, operand 1']
    #allocation9 [shape = 's32[2]{0}', space=sflag, size = 0x8, scoped, tag = 'scoped memory for tpu_custom_call.1']
    %9 = vsyncpa [#allocation3], 0
    %s10 = scalar_lea.sflag [#allocation3], 1
    %11 = vsyncpa %s10, 0
    %12 = vsyncpa [#allocation6], 0
    %s13 = scalar_lea.sflag [#allocation6], 1
    %14 = vsyncpa %s13, 0
    %15 = vsyncpa [#allocation4], 0
    %s16 = scalar_lea.sflag [#allocation4], 1
    %17 = vsyncpa %s16, 0
    %18 = vsyncpa [#allocation9], 0
    %s19 = scalar_lea.sflag [#allocation9], 1
    %20 = vsyncpa %s19, 0
    loop: start=0, step=1, limit=4
    $region2: #{tpu_custom_call.1} parent=1 // loop_pre_header
      _
    $region3: #{tpu_custom_call.1} parent=1 // loop_header
      %s22 = sphi 0, %s26
      %p23 = scmp.ge.s32.totalorder %s22, 4
      %s32 = sphi 0, %s34
      %s35 = sphi 0, %s32
      %s36 = sphi 0, %s35
      %s52 = sphi 0, %s36
      %s58 = sphi 0, %s60
      %s61 = sphi 0, %s58
      %s62 = sphi 0, %s61
      %s78 = sphi 0, %s62
      %s84 = sphi 0, %s86
      %s87 = sphi 0, %s84
      %s88 = sphi 0, %s87
      %s104 = sphi 0, %s88
      %s110 = sphi 0, %s112
      %s113 = sphi 0, %s110
      %s114 = sphi 0, %s113
      %s130 = sphi 0, %s114
    $region4: #{tpu_custom_call.1} parent=1 // loop_header_branch
      %25 = sbr.rel (%p23) target = $region8
    $region5: #{tpu_custom_call.1} parent=1 // loop_body
      %s27 = ssub.s32 %s22, 1
      %s28 = ssub.s32 %s22, 2
      %s29 = sadd.s32 %s22, 1
      %s30 = ssub.s32 %s22, %s29
      %p31 = scmp.eq.s32.totalorder %s30, 0
      %s33 = sadd.s32 %s32, 1
      %s34 = scalar_select %p31, %s32, %s33
      %p37 = pneg %p31
      %p38 = scmp.eq.s32.totalorder %s22, 1
      %p39 = por %p37, %p38
      %p40 = scmp.ne.s32.totalorder %s32, %s35
      %p41 = scmp.eq.s32.totalorder %s22, 0
      %p42 = por %p40, %p41
      %p43 = scmp.ne.s32.totalorder %s32, %s35
      %p44 = scmp.eq.s32.totalorder %s27, 1
      %p45 = por %p43, %p44
      %p46 = scmp.ne.s32.totalorder %s35, %s36
      %p47 = scmp.eq.s32.totalorder %s27, 0
      %p48 = por %p46, %p47
      %p49 = scmp.ne.s32.totalorder %s35, %s36
      %p50 = scmp.eq.s32.totalorder %s28, 1
      %p51 = por %p49, %p50
      %p53 = scmp.ne.s32.totalorder %s36, %s52
      %p54 = scmp.eq.s32.totalorder %s28, 0
      %p55 = por %p53, %p54
      %s56 = ssub.s32 %s22, %s29
      %p57 = scmp.eq.s32.totalorder %s56, 0
      %s59 = sadd.s32 %s58, 1
      %s60 = scalar_select %p57, %s58, %s59
      %p63 = pneg %p57
      %p64 = scmp.eq.s32.totalorder %s22, 1
      %p65 = por %p63, %p64
      %p66 = scmp.ne.s32.totalorder %s58, %s61
      %p67 = scmp.eq.s32.totalorder %s22, 0
      %p68 = por %p66, %p67
      %p69 = scmp.ne.s32.totalorder %s58, %s61
      %p70 = scmp.eq.s32.totalorder %s27, 1
      %p71 = por %p69, %p70
      %p72 = scmp.ne.s32.totalorder %s61, %s62
      %p73 = scmp.eq.s32.totalorder %s27, 0
      %p74 = por %p72, %p73
      %p75 = scmp.ne.s32.totalorder %s61, %s62
      %p76 = scmp.eq.s32.totalorder %s28, 1
      %p77 = por %p75, %p76
      %p79 = scmp.ne.s32.totalorder %s62, %s78
      %p80 = scmp.eq.s32.totalorder %s28, 0
      %p81 = por %p79, %p80
      %s82 = ssub.s32 %s22, %s29
      %p83 = scmp.eq.s32.totalorder %s82, 0
      %s85 = sadd.s32 %s84, 1
      %s86 = scalar_select %p83, %s84, %s85
      %p89 = pneg %p83
      %p90 = scmp.eq.s32.totalorder %s22, 1
      %p91 = por %p89, %p90
      %p92 = scmp.ne.s32.totalorder %s84, %s87
      %p93 = scmp.eq.s32.totalorder %s22, 0
      %p94 = por %p92, %p93
      %p95 = scmp.ne.s32.totalorder %s84, %s87
      %p96 = scmp.eq.s32.totalorder %s27, 1
      %p97 = por %p95, %p96
      %p98 = scmp.ne.s32.totalorder %s87, %s88
      %p99 = scmp.eq.s32.totalorder %s27, 0
      %p100 = por %p98, %p99
      %p101 = scmp.ne.s32.totalorder %s87, %s88
      %p102 = scmp.eq.s32.totalorder %s28, 1
      %p103 = por %p101, %p102
      %p105 = scmp.ne.s32.totalorder %s88, %s104
      %p106 = scmp.eq.s32.totalorder %s28, 0
      %p107 = por %p105, %p106
      %s108 = ssub.s32 %s22, %s29
      %p109 = scmp.eq.s32.totalorder %s108, 0
      %s111 = sadd.s32 %s110, 1
      %s112 = scalar_select %p109, %s110, %s111
      %p115 = pneg %p109
      %p116 = scmp.eq.s32.totalorder %s22, 1
      %p117 = por %p115, %p116
      %p118 = scmp.ne.s32.totalorder %s110, %s113
      %p119 = scmp.eq.s32.totalorder %s22, 0
      %p120 = por %p118, %p119
      %p121 = scmp.ne.s32.totalorder %s110, %s113
      %p122 = scmp.eq.s32.totalorder %s27, 1
      %p123 = por %p121, %p122
      %p124 = scmp.ne.s32.totalorder %s113, %s114
      %p125 = scmp.eq.s32.totalorder %s27, 0
      %p126 = por %p124, %p125
      %p127 = scmp.ne.s32.totalorder %s113, %s114
      %p128 = scmp.eq.s32.totalorder %s28, 1
      %p129 = por %p127, %p128
      %p131 = scmp.ne.s32.totalorder %s114, %s130
      %p132 = scmp.eq.s32.totalorder %s28, 0
      %p133 = por %p131, %p132
      %p134 = scmp.le.s32.totalorder 1, %s22
      %p135 = scmp.lt.s32.totalorder %s22, 3
      %p136 = pnand %p134, %p135
      %p137 = pneg %p136
      // Predicated region
      $region9: #{tpu_custom_call.1} parent=5 // pred_check
        _
      $region10: #{tpu_custom_call.1} parent=5 // pred_check_branch
        %139 = sbr.rel (%p136) target = $region12
      $region11: #{tpu_custom_call.1} parent=5 // pred_region
        %s140 = ssub.s32 %s22, 1
      $region12: #{tpu_custom_call.1} parent=5 // pred_fallthru
        _
      %p141 = scmp.lt.s32.totalorder %s22, 2
      // Predicated region
      $region13: #{tpu_custom_call.1} parent=5 // pred_check
        %p142 = pneg %p141
      $region14: #{tpu_custom_call.1} parent=5 // pred_check_branch
        %144 = sbr.rel (%p142) target = $region16
      $region15: #{tpu_custom_call.1} parent=5 // pred_region
        // Predicated region
        $region17: #{tpu_custom_call.1} parent=15 // pred_check
          %p145 = pneg %p42
        $region18: #{tpu_custom_call.1} parent=15 // pred_check_branch
          %147 = sbr.rel (%p145) target = $region20
        $region19: #{tpu_custom_call.1} parent=15 // pred_region
          %s148 = sand.u32 %s32, 1
          %s149 = scalar_lea.sflag [#allocation3], %s148
          %s150 = sand.u32 %s32, 1
          %s151 = smul.addr %s150, 16
          %s152 = scalar_lea.vmem [#allocation2], %s151
          %s154 = ssub.s32 256, 256
          %155 = vsyncadd %s149, %s154
          %s156 = smul.addr %s22, 2
          %s157 = smul.addr %s156, 128
          %s158 = scalar_lea.hbm %s0, %s157
          %s159 = sshll.u32 %s152, 4
          %s160 = int_to_ptr.vmem [resolvable:$true] %s159
          %165 = dma.hbm_to_vmem [thread:$0]  %s158, 256, %s160, %s149, 128, 128, 8
        $region20: #{tpu_custom_call.1} parent=15 // pred_fallthru
          _
        // Predicated region
        $region21: #{tpu_custom_call.1} parent=15 // pred_check
          %p166 = pneg %p68
        $region22: #{tpu_custom_call.1} parent=15 // pred_check_branch
          %168 = sbr.rel (%p166) target = $region24
        $region23: #{tpu_custom_call.1} parent=15 // pred_region
          %s169 = sand.u32 %s58, 1
          %s170 = scalar_lea.sflag [#allocation6], %s169
          %s171 = sand.u32 %s58, 1
          %s172 = smul.addr %s171, 8
          %s173 = scalar_lea.vmem [#allocation5], %s172
          %s175 = ssub.s32 128, 128
          %176 = vsyncadd %s170, %s175
          %s177 = smul.addr %s22, 128
          %s178 = scalar_lea.hbm %s1, %s177
          %s180 = sshll.u32 %s173, 4
          %s181 = int_to_ptr.vmem [resolvable:$true] %s180
          %183 = dma.hbm_to_vmem [thread:$0]  %s178, 128, %s181, %s170
        $region24: #{tpu_custom_call.1} parent=15 // pred_fallthru
          _
      $region16: #{tpu_custom_call.1} parent=5 // pred_fallthru
        _
      %p184 = scmp.le.s32.totalorder 1, %s22
      %p185 = scmp.lt.s32.totalorder %s22, 3
      %p186 = pnand %p184, %p185
      %p187 = pneg %p186
      // Predicated region
      $region25: #{tpu_custom_call.1} parent=5 // pred_check
        _
      $region26: #{tpu_custom_call.1} parent=5 // pred_check_branch
        %189 = sbr.rel (%p186) target = $region28
      $region27: #{tpu_custom_call.1} parent=5 // pred_region
        %s190 = ssub.s32 %s22, 1
        %s191 = sand.u32 %s35, 1
        %s192 = scalar_lea.sflag [#allocation3], %s191
        %s193 = sand.u32 %s35, 1
        %s194 = smul.addr %s193, 16
        %s195 = scalar_lea.vmem [#allocation2], %s194
        // Predicated region
        $region29: #{tpu_custom_call.1} parent=27 // pred_check
          %p196 = pneg %p48
        $region30: #{tpu_custom_call.1} parent=27 // pred_check_branch
          %198 = sbr.rel (%p196) target = $region32
        $region31: #{tpu_custom_call.1} parent=27 // pred_region
          %199 = dma.done %s192, 256
        $region32: #{tpu_custom_call.1} parent=27 // pred_fallthru
          _
        %s200 = sand.u32 %s61, 1
        %s201 = scalar_lea.sflag [#allocation6], %s200
        %s202 = sand.u32 %s61, 1
        %s203 = smul.addr %s202, 8
        %s204 = scalar_lea.vmem [#allocation5], %s203
        // Predicated region
        $region33: #{tpu_custom_call.1} parent=27 // pred_check
          %p205 = pneg %p74
        $region34: #{tpu_custom_call.1} parent=27 // pred_check_branch
          %207 = sbr.rel (%p205) target = $region36
        $region35: #{tpu_custom_call.1} parent=27 // pred_region
          %208 = dma.done %s201, 128
        $region36: #{tpu_custom_call.1} parent=27 // pred_fallthru
          _
        %s209 = sand.u32 %s35, 1
        %s210 = scalar_lea.sflag [#allocation3], %s209
        %s211 = sand.u32 %s35, 1
        %s212 = smul.addr %s211, 16
        %s213 = scalar_lea.vmem [#allocation2], %s212
        %p214 = pneg %p48
        %p215 = pneg %p45
        %s216 = sand.u32 %s61, 1
        %s217 = scalar_lea.sflag [#allocation6], %s216
        %s218 = sand.u32 %s61, 1
        %s219 = smul.addr %s218, 8
        %s220 = scalar_lea.vmem [#allocation5], %s219
        %p221 = pneg %p74
        %p222 = pneg %p71
        %p223 = pneg %p100
        %p224 = pneg %p97
        %s225 = sand.u32 %s87, 1
        %s226 = scalar_lea.sflag [#allocation4], %s225
        %s227 = sand.u32 %s87, 1
        %s228 = smul.addr %s227, 16
        %s229 = scalar_lea.vmem [#allocation7], %s228
        %p230 = pneg %p126
        %p231 = pneg %p123
        %s232 = sand.u32 %s113, 1
        %s233 = scalar_lea.sflag [#allocation9], %s232
        %s234 = sand.u32 %s113, 1
        %s235 = smul.addr %s234, 8
        %s236 = scalar_lea.vmem [#allocation8], %s235
        %v237 = vld [vmem:[%s195] sm:$0xff]
        %v238 = vld [vmem:[%s195 + $0x8] sm:$0xff]
        %v239 = vld [vmem:[%s204] sm:$0xff]
        %vm240 = vcmask 261120
        %v242 = vsel %vm240, %v237, 0
        %v245 = vsel %vm240, %v238, 0
        %v248 = vsel %vm240, %v239, 0
        %250 = vmatprep.subr.mxu0 0.0
        %251 = vmatpush1.xpose.msra.mxu0 %v248
        %252 = vmatprep.subr.mxu0 0.0
        %253 = vmatpush1.xpose.msra.mxu0 0.0
        %254 = vmatprep.subr.mxu0 0.0
        %255 = vmatpush1.xpose.msra.mxu0 0.0
        %256 = vmatprep.subr.mxu0 0.0
        %257 = vmatpush1.xpose.msra.mxu0 0.0
        %258 = vmatprep.subr.mxu0 0.0
        %259 = vmatpush1.xpose.msra.mxu0 0.0
        %260 = vmatprep.subr.mxu0 0.0
        %261 = vmatpush1.xpose.msra.mxu0 0.0
        %262 = vmatprep.subr.mxu0 0.0
        %263 = vmatpush1.xpose.msra.mxu0 0.0
        %264 = vmatprep.subr.mxu0 0.0
        %265 = vmatpush1.xpose.msra.mxu0 0.0
        %266 = vmatprep.subr.mxu0 0.0
        %267 = vmatpush1.xpose.msra.mxu0 0.0
        %268 = vmatprep.subr.mxu0 0.0
        %269 = vmatpush1.xpose.msra.mxu0 0.0
        %270 = vmatprep.subr.mxu0 0.0
        %271 = vmatpush1.xpose.msra.mxu0 0.0
        %272 = vmatprep.subr.mxu0 0.0
        %273 = vmatpush1.xpose.msra.mxu0 0.0
        %274 = vmatprep.subr.mxu0 0.0
        %275 = vmatpush1.xpose.msra.mxu0 0.0
        %276 = vmatprep.subr.mxu0 0.0
        %277 = vmatpush1.xpose.msra.mxu0 0.0
        %278 = vmatprep.subr.mxu0 0.0
        %279 = vmatpush1.xpose.msra.mxu0 0.0
        %280 = vmatprep.subr.mxu0 0.0
        %281 = vmatpush1.xpose.msra.mxu0 0.0
        %282 = vmatprep.subr.mxu0 0.0
        %283 = vmatpush1.xpose.msra.mxu0 0.0
        %284 = vmatprep.subr.mxu0 0.0
        %285 = vmatpush1.xpose.msra.mxu0 0.0
        %286 = vmatprep.subr.mxu0 0.0
        %287 = vmatpush1.xpose.msra.mxu0 0.0
        %288 = vmatprep.subr.mxu0 0.0
        %289 = vmatpush1.xpose.msra.mxu0 0.0
        %290 = vmatprep.subr.mxu0 0.0
        %291 = vmatpush1.xpose.msra.mxu0 0.0
        %292 = vmatprep.subr.mxu0 0.0
        %293 = vmatpush1.xpose.msra.mxu0 0.0
        %294 = vmatprep.subr.mxu0 0.0
        %295 = vmatpush1.xpose.msra.mxu0 0.0
        %296 = vmatprep.subr.mxu0 0.0
        %297 = vmatpush1.xpose.msra.mxu0 0.0
        %298 = vmatprep.subr.mxu0 0.0
        %299 = vmatpush1.xpose.msra.mxu0 0.0
        %300 = vmatprep.subr.mxu0 0.0
        %301 = vmatpush1.xpose.msra.mxu0 0.0
        %302 = vmatprep.subr.mxu0 0.0
        %303 = vmatpush1.xpose.msra.mxu0 0.0
        %304 = vmatprep.subr.mxu0 0.0
        %305 = vmatpush1.xpose.msra.mxu0 0.0
        %306 = vmatprep.subr.mxu0 0.0
        %307 = vmatpush1.xpose.msra.mxu0 0.0
        %308 = vmatprep.subr.mxu0 0.0
        %309 = vmatpush1.xpose.msra.mxu0 0.0
        %310 = vmatprep.subr.mxu0 0.0
        %311 = vmatpush1.xpose.msra.mxu0 0.0
        %312 = vmatprep.subr.mxu0 0.0
        %313 = vmatpush1.xpose.msra.mxu0 0.0
        %314 = vmatprep.mubr.f32.mxu0 0.0
        %315 = vmatmul.mubr.f32.gmra.mrb[0].mxu0 %v242
        %v316 = vpop.f32.mrb[0].mxu0
        %v317 = vadd.f32 0.0, %v316
        %v318 = vpop.f32.mrb[0].mxu0
        %319 = vmatprep.mubr.f32.mxu0 0.0
        %320 = vmatmul.mubr.f32.gmra.mrb[0].mxu0 %v245
        %v321 = vpop.f32.mrb[0].mxu0
        %v322 = vadd.f32 0.0, %v321
        %v323 = vpop.f32.mrb[0].mxu0
        %324 = vdwg.mxu0
        %v325 = vmul.f32 %v317, 0.17677669
        %v326 = vmul.f32 %v322, 0.17677669
        %vm327 = vcmask 64512
        %v328 = vsel %vm327, %v325, -inf
        %329 = vmax.xlane.f32.xlu0 %v328
        %v330 = vpop.xlane.xlu0 %329
        %v331 = vsel %vm327, %v326, -inf
        %332 = vmax.xlane.f32.xlu0 %v331
        %v333 = vpop.xlane.xlu0 %332
        %v334 = vsub.f32 %v325, %v330
        %v335 = vsub.f32 %v326, %v333
        %v336 = vmul.f32 %v334, 1.442695
        %v337 = vpow.pop %v336
        %v338 = vmul.f32 %v335, 1.442695
        %v339 = vpow.pop %v338
        %v340 = vsel %vm327, %v337, 0.0
        %341 = vadd.xlane.f32.xlu0 %v340
        %v342 = vpop.xlane.xlu0 %341
        %v343 = vsel %vm327, %v339, 0.0
        %344 = vadd.xlane.f32.xlu0 %v343
        %v345 = vpop.xlane.xlu0 %344
        %v346 = vrcp.pop %v342
        %v347 = vmul.f32 %v337, %v346
        %v348 = vrcp.pop %v345
        %v349 = vmul.f32 %v339, %v348
        %v351 = vsel %vm327, %v347, 0
        %v354 = vsel %vm327, %v349, 0
        %356 = vmatprep.subr.mxu0 0.0
        %357 = vmatpush1.msra.mxu0 %v239
        %358 = vmatprep.subr.mxu0 0.0
        %359 = vmatpush1.msra.mxu0 0.0
        %360 = vmatprep.subr.mxu0 0.0
        %361 = vmatpush1.msra.mxu0 0.0
        %362 = vmatprep.subr.mxu0 0.0
        %363 = vmatpush1.msra.mxu0 0.0
        %364 = vmatprep.subr.mxu0 0.0
        %365 = vmatpush1.msra.mxu0 0.0
        %366 = vmatprep.subr.mxu0 0.0
        %367 = vmatpush1.msra.mxu0 0.0
        %368 = vmatprep.subr.mxu0 0.0
        %369 = vmatpush1.msra.mxu0 0.0
        %370 = vmatprep.subr.mxu0 0.0
        %371 = vmatpush1.msra.mxu0 0.0
        %372 = vmatprep.subr.mxu0 0.0
        %373 = vmatpush1.msra.mxu0 0.0
        %374 = vmatprep.subr.mxu0 0.0
        %375 = vmatpush1.msra.mxu0 0.0
        %376 = vmatprep.subr.mxu0 0.0
        %377 = vmatpush1.msra.mxu0 0.0
        %378 = vmatprep.subr.mxu0 0.0
        %379 = vmatpush1.msra.mxu0 0.0
        %380 = vmatprep.subr.mxu0 0.0
        %381 = vmatpush1.msra.mxu0 0.0
        %382 = vmatprep.subr.mxu0 0.0
        %383 = vmatpush1.msra.mxu0 0.0
        %384 = vmatprep.subr.mxu0 0.0
        %385 = vmatpush1.msra.mxu0 0.0
        %386 = vmatprep.subr.mxu0 0.0
        %387 = vmatpush1.msra.mxu0 0.0
        %388 = vmatprep.subr.mxu0 0.0
        %389 = vmatpush1.msra.mxu0 0.0
        %390 = vmatprep.subr.mxu0 0.0
        %391 = vmatpush1.msra.mxu0 0.0
        %392 = vmatprep.subr.mxu0 0.0
        %393 = vmatpush1.msra.mxu0 0.0
        %394 = vmatprep.subr.mxu0 0.0
        %395 = vmatpush1.msra.mxu0 0.0
        %396 = vmatprep.subr.mxu0 0.0
        %397 = vmatpush1.msra.mxu0 0.0
        %398 = vmatprep.subr.mxu0 0.0
        %399 = vmatpush1.msra.mxu0 0.0
        %400 = vmatprep.subr.mxu0 0.0
        %401 = vmatpush1.msra.mxu0 0.0
        %402 = vmatprep.subr.mxu0 0.0
        %403 = vmatpush1.msra.mxu0 0.0
        %404 = vmatprep.subr.mxu0 0.0
        %405 = vmatpush1.msra.mxu0 0.0
        %406 = vmatprep.subr.mxu0 0.0
        %407 = vmatpush1.msra.mxu0 0.0
        %408 = vmatprep.subr.mxu0 0.0
        %409 = vmatpush1.msra.mxu0 0.0
        %410 = vmatprep.subr.mxu0 0.0
        %411 = vmatpush1.msra.mxu0 0.0
        %412 = vmatprep.subr.mxu0 0.0
        %413 = vmatpush1.msra.mxu0 0.0
        %414 = vmatprep.subr.mxu0 0.0
        %415 = vmatpush1.msra.mxu0 0.0
        %416 = vmatprep.subr.mxu0 0.0
        %417 = vmatpush1.msra.mxu0 0.0
        %418 = vmatprep.subr.mxu0 0.0
        %419 = vmatpush1.msra.mxu0 0.0
        %420 = vmatprep.mubr.f32.mxu0 0.0
        %421 = vmatmul.mubr.f32.gmra.mrb[0].mxu0 %v351
        %v422 = vpop.f32.mrb[0].mxu0
        %v423 = vadd.f32 0.0, %v422
        %v424 = vpop.f32.mrb[0].mxu0
        %425 = vmatprep.mubr.f32.mxu0 0.0
        %426 = vmatmul.mubr.f32.gmra.mrb[0].mxu0 %v354
        %v427 = vpop.f32.mrb[0].mxu0
        %v428 = vadd.f32 0.0, %v427
        %v429 = vpop.f32.mrb[0].mxu0
        %430 = vdwg.mxu0
        %431 = vst.msk [vmem:[%s229] sm:$0xff] %vm240, %v423
        %432 = vst.msk [vmem:[%s229 + $0x8] sm:$0xff] %vm240, %v428
        %v433 = vmax.f32 %v328, %v331
        %v434 = vrot.slane %v433, 4
        %v435 = vmax.f32 %v433, %v434
        %v436 = vrot.slane %v435, 2
        %v437 = vmax.f32 %v435, %v436
        %v438 = vrot.slane %v437, 1
        %v439 = vmax.f32 %v437, %v438
        %v440 = vsub.f32 %v325, %v439
        %v441 = vsub.f32 %v326, %v439
        %v442 = vmul.f32 %v440, 1.442695
        %v443 = vpow.pop %v442
        %v444 = vmul.f32 %v441, 1.442695
        %v445 = vpow.pop %v444
        %v446 = vsel %vm327, %v443, 0.0
        %v447 = vsel %vm327, %v445, 0.0
        %v448 = vadd.f32 %v446, %v447
        %v449 = vrot.slane %v448, 4
        %v450 = vadd.f32 %v448, %v449
        %v451 = vrot.slane %v450, 2
        %v452 = vadd.f32 %v450, %v451
        %v453 = vrot.slane %v452, 1
        %v454 = vadd.f32 %v452, %v453
        %v455 = vrcp.pop %v454
        %v456 = vmul.f32 %v443, %v455
        %v457 = vmul.f32 %v445, %v455
        %458 = vxpose.xlu0.b32.start [1/16] %v456, 128
        %459 = vxpose.xlu0.b32.cont [2/16] %v457, 128
        %460 = vxpose.xlu0.b32.cont [3/16] 0.0, 128
        %461 = vxpose.xlu0.b32.cont [4/16] 0.0, 128
        %462 = vxpose.xlu0.b32.cont [5/16] 0.0, 128
        %463 = vxpose.xlu0.b32.cont [6/16] 0.0, 128
        %464 = vxpose.xlu0.b32.cont [7/16] 0.0, 128
        %465 = vxpose.xlu0.b32.cont [8/16] 0.0, 128
        %466 = vxpose.xlu0.b32.cont [9/16] 0.0, 128
        %467 = vxpose.xlu0.b32.cont [10/16] 0.0, 128
        %468 = vxpose.xlu0.b32.cont [11/16] 0.0, 128
        %469 = vxpose.xlu0.b32.cont [12/16] 0.0, 128
        %470 = vxpose.xlu0.b32.cont [13/16] 0.0, 128
        %471 = vxpose.xlu0.b32.cont [14/16] 0.0, 128
        %472 = vxpose.xlu0.b32.cont [15/16] 0.0, 128
        %473 = vxpose.xlu0.b32.end [16/16] 0.0, 128
        %v474 = vpop.trf.xlu0
        %v475 = vpop.trf.xlu0
        %v476 = vpop.trf.xlu0
        %v477 = vpop.trf.xlu0
        %v478 = vpop.trf.xlu0
        %v479 = vpop.trf.xlu0
        %v480 = vpop.trf.xlu0
        %v481 = vpop.trf.xlu0
        %v482 = vpop.trf.xlu0
        %v483 = vpop.trf.xlu0
        %v484 = vpop.trf.xlu0
        %v485 = vpop.trf.xlu0
        %v486 = vpop.trf.xlu0
        %v487 = vpop.trf.xlu0
        %v488 = vpop.trf.xlu0
        %v489 = vpop.trf.xlu0
        %vm490 = vcmask 130048
        %v492 = vsel %vm490, %v474, 0
        %494 = vmatprep.subr.mxu0 0.0
        %495 = vmatpush1.msra.mxu0 %v237
        %496 = vmatprep.subr.mxu0 0.0
        %497 = vmatpush1.msra.mxu0 %v238
        %498 = vmatprep.subr.mxu0 0.0
        %499 = vmatpush1.msra.mxu0 0.0
        %500 = vmatprep.subr.mxu0 0.0
        %501 = vmatpush1.msra.mxu0 0.0
        %502 = vmatprep.subr.mxu0 0.0
        %503 = vmatpush1.msra.mxu0 0.0
        %504 = vmatprep.subr.mxu0 0.0
        %505 = vmatpush1.msra.mxu0 0.0
        %506 = vmatprep.subr.mxu0 0.0
        %507 = vmatpush1.msra.mxu0 0.0
        %508 = vmatprep.subr.mxu0 0.0
        %509 = vmatpush1.msra.mxu0 0.0
        %510 = vmatprep.subr.mxu0 0.0
        %511 = vmatpush1.msra.mxu0 0.0
        %512 = vmatprep.subr.mxu0 0.0
        %513 = vmatpush1.msra.mxu0 0.0
        %514 = vmatprep.subr.mxu0 0.0
        %515 = vmatpush1.msra.mxu0 0.0
        %516 = vmatprep.subr.mxu0 0.0
        %517 = vmatpush1.msra.mxu0 0.0
        %518 = vmatprep.subr.mxu0 0.0
        %519 = vmatpush1.msra.mxu0 0.0
        %520 = vmatprep.subr.mxu0 0.0
        %521 = vmatpush1.msra.mxu0 0.0
        %522 = vmatprep.subr.mxu0 0.0
        %523 = vmatpush1.msra.mxu0 0.0
        %524 = vmatprep.subr.mxu0 0.0
        %525 = vmatpush1.msra.mxu0 0.0
        %526 = vmatprep.subr.mxu0 0.0
        %527 = vmatpush1.msra.mxu0 0.0
        %528 = vmatprep.subr.mxu0 0.0
        %529 = vmatpush1.msra.mxu0 0.0
        %530 = vmatprep.subr.mxu0 0.0
        %531 = vmatpush1.msra.mxu0 0.0
        %532 = vmatprep.subr.mxu0 0.0
        %533 = vmatpush1.msra.mxu0 0.0
        %534 = vmatprep.subr.mxu0 0.0
        %535 = vmatpush1.msra.mxu0 0.0
        %536 = vmatprep.subr.mxu0 0.0
        %537 = vmatpush1.msra.mxu0 0.0
        %538 = vmatprep.subr.mxu0 0.0
        %539 = vmatpush1.msra.mxu0 0.0
        %540 = vmatprep.subr.mxu0 0.0
        %541 = vmatpush1.msra.mxu0 0.0
        %542 = vmatprep.subr.mxu0 0.0
        %543 = vmatpush1.msra.mxu0 0.0
        %544 = vmatprep.subr.mxu0 0.0
        %545 = vmatpush1.msra.mxu0 0.0
        %546 = vmatprep.subr.mxu0 0.0
        %547 = vmatpush1.msra.mxu0 0.0
        %548 = vmatprep.subr.mxu0 0.0
        %549 = vmatpush1.msra.mxu0 0.0
        %550 = vmatprep.subr.mxu0 0.0
        %551 = vmatpush1.msra.mxu0 0.0
        %552 = vmatprep.subr.mxu0 0.0
        %553 = vmatpush1.msra.mxu0 0.0
        %554 = vmatprep.subr.mxu0 0.0
        %555 = vmatpush1.msra.mxu0 0.0
        %556 = vmatprep.subr.mxu0 0.0
        %557 = vmatpush1.msra.mxu0 0.0
        %558 = vmatprep.mubr.f32.mxu0 0.0
        %559 = vmatmul.mubr.f32.gmra.mrb[0].mxu0 %v492
        %v560 = vpop.f32.mrb[0].mxu0
        %v561 = vadd.f32 0.0, %v560
        %v562 = vpop.f32.mrb[0].mxu0
        %563 = vdwg.mxu0
        %564 = vst.msk [vmem:[%s236] sm:$0xff] %vm240, %v561
        %s565 = sand.u32 %s87, 1
        %s566 = scalar_lea.sflag [#allocation4], %s565
        %s567 = sand.u32 %s87, 1
        %s568 = smul.addr %s567, 16
        %s569 = scalar_lea.vmem [#allocation7], %s568
        %s570 = sand.u32 %s113, 1
        %s571 = scalar_lea.sflag [#allocation9], %s570
        %s572 = sand.u32 %s113, 1
        %s573 = smul.addr %s572, 8
        %s574 = scalar_lea.vmem [#allocation8], %s573
        // Predicated region
        $region37: #{tpu_custom_call.1} parent=27 // pred_check
          %p575 = pneg %p97
        $region38: #{tpu_custom_call.1} parent=27 // pred_check_branch
          %577 = sbr.rel (%p575) target = $region40
        $region39: #{tpu_custom_call.1} parent=27 // pred_region
          %s579 = ssub.s32 256, 256
          %580 = vsyncadd %s566, %s579
          %s581 = smul.addr %s27, 2
          %s582 = smul.addr %s581, 128
          %s583 = scalar_lea.hbm %s2, %s582
          %s584 = sshll.u32 %s569, 4
          %s585 = int_to_ptr.vmem [resolvable:$true] %s584
          %590 = dma.vmem_to_hbm [thread:$0]  %s585, 256, %s583, %s566, 128, 128, 8
        $region40: #{tpu_custom_call.1} parent=27 // pred_fallthru
          _
        // Predicated region
        $region41: #{tpu_custom_call.1} parent=27 // pred_check
          %p591 = pneg %p123
        $region42: #{tpu_custom_call.1} parent=27 // pred_check_branch
          %593 = sbr.rel (%p591) target = $region44
        $region43: #{tpu_custom_call.1} parent=27 // pred_region
          %s595 = ssub.s32 128, 128
          %596 = vsyncadd %s571, %s595
          %s597 = smul.addr %s27, 128
          %s598 = scalar_lea.hbm %s3, %s597
          %s600 = sshll.u32 %s574, 4
          %s601 = int_to_ptr.vmem [resolvable:$true] %s600
          %603 = dma.vmem_to_hbm [thread:$0]  %s601, 128, %s598, %s571
        $region44: #{tpu_custom_call.1} parent=27 // pred_fallthru
          _
      $region28: #{tpu_custom_call.1} parent=5 // pred_fallthru
        _
      %p604 = scmp.le.s32.totalorder 2, %s22
      // Predicated region
      $region45: #{tpu_custom_call.1} parent=5 // pred_check
        %p605 = pneg %p604
      $region46: #{tpu_custom_call.1} parent=5 // pred_check_branch
        %607 = sbr.rel (%p605) target = $region48
      $region47: #{tpu_custom_call.1} parent=5 // pred_region
        %s608 = ssub.s32 %s22, 2
        // Predicated region
        $region49: #{tpu_custom_call.1} parent=47 // pred_check
          %p609 = pneg %p103
        $region50: #{tpu_custom_call.1} parent=47 // pred_check_branch
          %611 = sbr.rel (%p609) target = $region52
        $region51: #{tpu_custom_call.1} parent=47 // pred_region
          %s612 = sand.u32 %s88, 1
          %s613 = scalar_lea.sflag [#allocation4], %s612
          %s614 = sand.u32 %s88, 1
          %s615 = smul.addr %s614, 16
          %s616 = scalar_lea.vmem [#allocation7], %s615
          %617 = dma.done %s613, 256
        $region52: #{tpu_custom_call.1} parent=47 // pred_fallthru
          _
        // Predicated region
        $region53: #{tpu_custom_call.1} parent=47 // pred_check
          %p618 = pneg %p129
        $region54: #{tpu_custom_call.1} parent=47 // pred_check_branch
          %620 = sbr.rel (%p618) target = $region56
        $region55: #{tpu_custom_call.1} parent=47 // pred_region
          %s621 = sand.u32 %s114, 1
          %s622 = scalar_lea.sflag [#allocation9], %s621
          %s623 = sand.u32 %s114, 1
          %s624 = smul.addr %s623, 8
          %s625 = scalar_lea.vmem [#allocation8], %s624
          %626 = dma.done %s622, 128
        $region56: #{tpu_custom_call.1} parent=47 // pred_fallthru
          _
      $region48: #{tpu_custom_call.1} parent=5 // pred_fallthru
        _
    $region6: #{tpu_custom_call.1} parent=1 // loop_footer
      %s26 = sadd.s32 1, %s22
    $region7: #{tpu_custom_call.1} parent=1 // loop_footer_branch
      %21 = sbr.rel target = $region3
    $region8: #{tpu_custom_call.1} parent=1 // loop_exit
      _
    %627 = vsyncpa [#allocation3], 1
    %s628 = scalar_lea.sflag [#allocation3], 1
    %629 = vsyncpa %s628, 1
    %630 = vsyncpa [#allocation6], 1
    %s631 = scalar_lea.sflag [#allocation6], 1
    %632 = vsyncpa %s631, 1
    %633 = vsyncpa [#allocation4], 1
    %s634 = scalar_lea.sflag [#allocation4], 1
    %635 = vsyncpa %s634, 1
    %636 = vsyncpa [#allocation9], 1
    %s637 = scalar_lea.sflag [#allocation9], 1
    %638 = vsyncpa %s637, 1

</llo_original>
